<compile_context>
chip_gen: v7x
topology: tpu7x:2x2x1
jax: 0.10.0
libtpu: 0.0.40
codegen_flags: <defaults>
</compile_context>

<pallas_src>
import jax
import jax.numpy as jnp
import numpy as np
from jax.experimental import pallas as pl
from jax.experimental.pallas import tpu as pltpu


def _round_up(x, m):
    return ((x + m - 1) // m) * m


# ---------------------------------------------------------------------------
# Path A: embedding table resident in VMEM; gather + mean-pool as one matmul.
# ---------------------------------------------------------------------------
def _resident_kernel(ids_ref, emb_ref, w_ref, b_ref, o_ref):
    ids = ids_ref[...]                                   # (TB, S) int32
    tb, seq = ids.shape
    vocab = emb_ref.shape[0]

    # counts[t, v] = number of occurrences of token v in row t of this tile.
    # Built with S static lane-dense (TB, V) compares; turns the per-token
    # gather + mean into a single MXU matmul.
    vocab_iota = jax.lax.broadcasted_iota(jnp.int32, (tb, vocab), 1)
    counts = jnp.zeros((tb, vocab), jnp.float32)
    for s in range(seq):                                 # S is static & small
        counts = counts + (vocab_iota == ids[:, s:s + 1]).astype(jnp.float32)

    pooled = jnp.dot(counts.astype(emb_ref.dtype), emb_ref[...],
                     preferred_element_type=jnp.float32) * (1.0 / seq)
    o_ref[...] = (jnp.dot(pooled.astype(w_ref.dtype), w_ref[...],
                          preferred_element_type=jnp.float32)
                  + b_ref[...].astype(jnp.float32)).astype(o_ref.dtype)


def _text_encoder_resident(token_ids, emb_table, w_t, bias2d, tb):
    b_pad, seq = token_ids.shape
    vocab, emb_dim = emb_table.shape
    out_dim = w_t.shape[1]
    n_tiles = b_pad // tb

    # Budget scoped VMEM for the resident table/weights (with 2x headroom for
    # pipelining buffers); keep the cap under v7x's 64 MiB physical VMEM.
    resident_bytes = 2 * (emb_table.size * emb_table.dtype.itemsize
                          + w_t.size * w_t.dtype.itemsize) + (4 << 20)
    vmem_limit = int(min(max(resident_bytes, 32 << 20), 60 << 20))

    return pl.pallas_call(
        _resident_kernel,
        out_shape=jax.ShapeDtypeStruct((b_pad, out_dim), jnp.float32),
        grid=(n_tiles,),
        in_specs=[
            pl.BlockSpec((tb, seq), lambda i: (i, 0)),            # token ids
            pl.BlockSpec((vocab, emb_dim), lambda i: (0, 0)),     # full table
            pl.BlockSpec((emb_dim, out_dim), lambda i: (0, 0)),   # W^T
            pl.BlockSpec((1, out_dim), lambda i: (0, 0)),         # bias
        ],
        out_specs=pl.BlockSpec((tb, out_dim), lambda i: (i, 0)),
        compiler_params=pltpu.CompilerParams(
            dimension_semantics=("parallel",),
            vmem_limit_bytes=vmem_limit),
    )(token_ids, emb_table, w_t, bias2d)


# ---------------------------------------------------------------------------
# Path B: table stays in HBM; TB Element-gathered rows per grid step.
# ---------------------------------------------------------------------------
def _make_gather_kernel(tb):
    def kernel(ids_ref, *args):
        del ids_ref                          # token ids only drive the index_maps
        row_refs = args[:tb]                 # TB refs, each (1, E)
        w_ref, b_ref, o_ref, pooled_ref = args[tb:]
        s = pl.program_id(1)
        ns = pl.num_programs(1)

        # NOTE: correctness relies on the sequence axis being the innermost,
        # sequentially executed ("arbitrary") grid axis; do not reorder it or
        # mark it parallel.
        @pl.when(s == 0)
        def _():
            pooled_ref[...] = jnp.zeros_like(pooled_ref)

        # Stack the TB gathered rows and accumulate in one dense (TB, E) add
        # (no per-row sublane-sparse stores, no per-row scratch).
        rows = jnp.concatenate([r[...] for r in row_refs], axis=0)   # (TB, E)
        pooled_ref[...] += rows.astype(jnp.float32)

        # End of the sequence sweep: mean + one dense MXU projection per tile.
        @pl.when(s == ns - 1)
        def _():
            pooled = (pooled_ref[...] * (1.0 / ns)).astype(w_ref.dtype)
            o_ref[...] = (jnp.dot(pooled, w_ref[...],
                                  preferred_element_type=jnp.float32)
                          + b_ref[...].astype(jnp.float32)).astype(o_ref.dtype)
    return kernel


def _text_encoder_gather(token_ids, emb_table, w_t, bias2d, tb):
    b_pad, seq = token_ids.shape
    vocab, emb_dim = emb_table.shape
    out_dim = w_t.shape[1]
    n_tiles = b_pad // tb

    # Flat 1D int32 scalar-prefetch ids (avoids 2D SMEM padding blowup).
    ids_flat = token_ids.reshape(-1)

    def row_spec(t):
        # Element offset into the vocab axis for tile-row `t` at seq pos `s`.
        def idx(i, s, ids):
            return (ids[(i * tb + t) * seq + s], 0)
        return pl.BlockSpec((pl.Element(1), emb_dim), idx)

    grid_spec = pltpu.PrefetchScalarGridSpec(
        num_scalar_prefetch=1,
        grid=(n_tiles, seq),
        in_specs=([row_spec(t) for t in range(tb)]
                  + [pl.BlockSpec((emb_dim, out_dim), lambda i, s, ids: (0, 0)),
                     pl.BlockSpec((1, out_dim), lambda i, s, ids: (0, 0))]),
        out_specs=pl.BlockSpec((tb, out_dim), lambda i, s, ids: (i, 0)),
        scratch_shapes=[pltpu.VMEM((tb, emb_dim), jnp.float32)],
    )

    return pl.pallas_call(
        _make_gather_kernel(tb),
        out_shape=jax.ShapeDtypeStruct((b_pad, out_dim), jnp.float32),
        grid_spec=grid_spec,
        compiler_params=pltpu.CompilerParams(
            dimension_semantics=("parallel", "arbitrary")),
    )(ids_flat, *([emb_table] * tb), w_t, bias2d)


# ---------------------------------------------------------------------------
# Public wrapper (dispatch on table size).
# ---------------------------------------------------------------------------
def text_encoder(token_ids, emb_table, w_t, bias, *, batch_tile=128,
                 resident_table_max_bytes=24 << 20, force_gather_path=False):
    """token_ids (B, S) int; emb_table (V, E); w_t (E, O) (= torch W.T);
    bias (O,)  ->  (B, O) float32."""
    B, S = token_ids.shape
    O = w_t.shape[1]
    token_ids = token_ids.astype(jnp.int32)
    bias2d = bias.reshape(1, O)

    table_bytes = emb_table.size * emb_table.dtype.itemsize
    use_resident = (not force_gather_path) and table_bytes <= resident_table_max_bytes

    if use_resident:
        # Big batch tile fills the MXU; one grid step per tile.
        tb = min(_round_up(batch_tile, 8), _round_up(B, 8))
        b_pad = _round_up(B, tb)
        # v7x has 2 TensorCores: keep >= 2 tiles on the "parallel" axis when possible.
        if b_pad // tb < 2 and tb >= 16:
            tb = _round_up(tb // 2, 8)
            b_pad = _round_up(B, tb)
    else:
        # Gather path uses TB separate pl.Element row specs -> keep TB modest.
        tb = 8
        b_pad = _round_up(B, tb)

    if b_pad != B:
        # Padded rows gather token 0 and are sliced off below (harmless).
        token_ids = jnp.concatenate(
            [token_ids, jnp.zeros((b_pad - B, S), jnp.int32)], axis=0)

    if use_resident:
        out = _text_encoder_resident(token_ids, emb_table, w_t, bias2d, tb)
    else:
        out = _text_encoder_gather(token_ids, emb_table, w_t, bias2d, tb)
    return out[:B]


if __name__ == "__main__":
    key = jax.random.PRNGKey(0)
    k1, k2, k3, k4 = jax.random.split(key, 4)

    # Module-consistent small shapes: embed_dim=256, output_dim=128.
    vocab_size, embed_dim, output_dim = 512, 256, 128
    B, S = 8, 8

    token_ids = jax.random.randint(k1, (B, S), 0, vocab_size, dtype=jnp.int32)
    emb_table = jax.random.normal(k2, (vocab_size, embed_dim), jnp.float32) * 0.02
    w = jax.random.normal(k3, (output_dim, embed_dim), jnp.float32) * 0.05  # torch (O, E)
    bias = jax.random.normal(k4, (output_dim,), jnp.float32) * 0.01
    w_t = jnp.asarray(w.T)

    # Pure-JAX reference of the PyTorch forward.
    ref = jnp.mean(emb_table[token_ids], axis=1) @ w.T + bias

    # Path A: resident-table fast path (default dispatch at these shapes).
    out_fast = jax.block_until_ready(text_encoder(token_ids, emb_table, w_t, bias))
    np.testing.assert_allclose(np.asarray(out_fast), np.asarray(ref),
                               rtol=1e-5, atol=1e-5)

    # Path B: HBM-gather fallback (forced) — verifies the large-vocab path.
    out_gather = jax.block_until_ready(
        text_encoder(token_ids, emb_table, w_t, bias, force_gather_path=True))
    np.testing.assert_allclose(np.asarray(out_gather), np.asarray(ref),
                               rtol=1e-5, atol=1e-5)

    print("KERNEL_OK")
</pallas_src>

<mosaic_0001>
module attributes {stable_mosaic.version = 11 : i64} {
  func.func @_resident_kernel(%arg0: i32, %arg1: memref<8x8xi32, #tpu.memory_space<vmem>>, %arg2: memref<512x256xf32, #tpu.memory_space<vmem>>, %arg3: memref<256x128xf32, #tpu.memory_space<vmem>>, %arg4: memref<1x128xf32, #tpu.memory_space<vmem>>, %arg5: memref<8x128xf32, #tpu.memory_space<vmem>>) attributes {dimension_semantics = [#tpu.dimension_semantics<parallel>], iteration_bounds = array<i64: 1>, scalar_prefetch = 0 : i64, scratch_operands = 0 : i64, tpu.core_type = #tpu.core_type<tc>, window_params = [{transform_indices = @transform_0, window_bounds = array<i64: 8, 8>}, {pipeline_mode = #tpu.pipeline_mode<synchronous>, transform_indices = @transform_1, window_bounds = array<i64: 512, 256>}, {pipeline_mode = #tpu.pipeline_mode<synchronous>, transform_indices = @transform_2, window_bounds = array<i64: 256, 128>}, {pipeline_mode = #tpu.pipeline_mode<synchronous>, transform_indices = @transform_3, window_bounds = array<i64: 1, 128>}, {transform_indices = @transform_4, window_bounds = array<i64: 8, 128>}]} {
    %c0 = arith.constant 0 : index
    %c0_0 = arith.constant 0 : index
    %0 = vector.load %arg1[%c0, %c0_0] : memref<8x8xi32, #tpu.memory_space<vmem>>, vector<8x8xi32>
    %1 = tpu.iota {dimensions = array<i32: 1>} : vector<8x512xi32>
    %cst = arith.constant 0.000000e+00 : f32
    %2 = vector.broadcast %cst : f32 to vector<8x512xf32>
    %3 = vector.extract_strided_slice %0 {offsets = [0, 0], sizes = [8, 1], strides = [1, 1]} : vector<8x8xi32> to vector<8x1xi32>
    %4 = vector.broadcast %3 : vector<8x1xi32> to vector<8x512xi32>
    %5 = arith.cmpi eq, %1, %4 : vector<8x512xi32>
    %6 = arith.extui %5 : vector<8x512xi1> to vector<8x512xi32>
    %7 = arith.sitofp %6 : vector<8x512xi32> to vector<8x512xf32>
    %8 = arith.addf %2, %7 : vector<8x512xf32>
    %9 = vector.extract_strided_slice %0 {offsets = [0, 1], sizes = [8, 1], strides = [1, 1]} : vector<8x8xi32> to vector<8x1xi32>
    %10 = vector.broadcast %9 : vector<8x1xi32> to vector<8x512xi32>
    %11 = arith.cmpi eq, %1, %10 : vector<8x512xi32>
    %12 = arith.extui %11 : vector<8x512xi1> to vector<8x512xi32>
    %13 = arith.sitofp %12 : vector<8x512xi32> to vector<8x512xf32>
    %14 = arith.addf %8, %13 : vector<8x512xf32>
    %15 = vector.extract_strided_slice %0 {offsets = [0, 2], sizes = [8, 1], strides = [1, 1]} : vector<8x8xi32> to vector<8x1xi32>
    %16 = vector.broadcast %15 : vector<8x1xi32> to vector<8x512xi32>
    %17 = arith.cmpi eq, %1, %16 : vector<8x512xi32>
    %18 = arith.extui %17 : vector<8x512xi1> to vector<8x512xi32>
    %19 = arith.sitofp %18 : vector<8x512xi32> to vector<8x512xf32>
    %20 = arith.addf %14, %19 : vector<8x512xf32>
    %21 = vector.extract_strided_slice %0 {offsets = [0, 3], sizes = [8, 1], strides = [1, 1]} : vector<8x8xi32> to vector<8x1xi32>
    %22 = vector.broadcast %21 : vector<8x1xi32> to vector<8x512xi32>
    %23 = arith.cmpi eq, %1, %22 : vector<8x512xi32>
    %24 = arith.extui %23 : vector<8x512xi1> to vector<8x512xi32>
    %25 = arith.sitofp %24 : vector<8x512xi32> to vector<8x512xf32>
    %26 = arith.addf %20, %25 : vector<8x512xf32>
    %27 = vector.extract_strided_slice %0 {offsets = [0, 4], sizes = [8, 1], strides = [1, 1]} : vector<8x8xi32> to vector<8x1xi32>
    %28 = vector.broadcast %27 : vector<8x1xi32> to vector<8x512xi32>
    %29 = arith.cmpi eq, %1, %28 : vector<8x512xi32>
    %30 = arith.extui %29 : vector<8x512xi1> to vector<8x512xi32>
    %31 = arith.sitofp %30 : vector<8x512xi32> to vector<8x512xf32>
    %32 = arith.addf %26, %31 : vector<8x512xf32>
    %33 = vector.extract_strided_slice %0 {offsets = [0, 5], sizes = [8, 1], strides = [1, 1]} : vector<8x8xi32> to vector<8x1xi32>
    %34 = vector.broadcast %33 : vector<8x1xi32> to vector<8x512xi32>
    %35 = arith.cmpi eq, %1, %34 : vector<8x512xi32>
    %36 = arith.extui %35 : vector<8x512xi1> to vector<8x512xi32>
    %37 = arith.sitofp %36 : vector<8x512xi32> to vector<8x512xf32>
    %38 = arith.addf %32, %37 : vector<8x512xf32>
    %39 = vector.extract_strided_slice %0 {offsets = [0, 6], sizes = [8, 1], strides = [1, 1]} : vector<8x8xi32> to vector<8x1xi32>
    %40 = vector.broadcast %39 : vector<8x1xi32> to vector<8x512xi32>
    %41 = arith.cmpi eq, %1, %40 : vector<8x512xi32>
    %42 = arith.extui %41 : vector<8x512xi1> to vector<8x512xi32>
    %43 = arith.sitofp %42 : vector<8x512xi32> to vector<8x512xf32>
    %44 = arith.addf %38, %43 : vector<8x512xf32>
    %45 = vector.extract_strided_slice %0 {offsets = [0, 7], sizes = [8, 1], strides = [1, 1]} : vector<8x8xi32> to vector<8x1xi32>
    %46 = vector.broadcast %45 : vector<8x1xi32> to vector<8x512xi32>
    %47 = arith.cmpi eq, %1, %46 : vector<8x512xi32>
    %48 = arith.extui %47 : vector<8x512xi1> to vector<8x512xi32>
    %49 = arith.sitofp %48 : vector<8x512xi32> to vector<8x512xf32>
    %50 = arith.addf %44, %49 : vector<8x512xf32>
    %c0_1 = arith.constant 0 : index
    %c0_2 = arith.constant 0 : index
    %51 = vector.load %arg2[%c0_1, %c0_2] : memref<512x256xf32, #tpu.memory_space<vmem>>, vector<512x256xf32>
    %cst_3 = arith.constant dense<0.000000e+00> : vector<8x256xf32>
    %52 = tpu.matmul %50, %51, %cst_3 {dimension_numbers = #tpu.dot_dimension_numbers<[1], [0], [0], [1], [0, 0, 1, 1], [], []>} : vector<8x512xf32>, vector<512x256xf32>, vector<8x256xf32> -> vector<8x256xf32>
    %cst_4 = arith.constant 1.250000e-01 : f32
    %53 = vector.broadcast %cst_4 : f32 to vector<8x256xf32>
    %54 = arith.mulf %52, %53 : vector<8x256xf32>
    %c0_5 = arith.constant 0 : index
    %c0_6 = arith.constant 0 : index
    %55 = vector.load %arg3[%c0_5, %c0_6] : memref<256x128xf32, #tpu.memory_space<vmem>>, vector<256x128xf32>
    %cst_7 = arith.constant dense<0.000000e+00> : vector<8x128xf32>
    %56 = tpu.matmul %54, %55, %cst_7 {dimension_numbers = #tpu.dot_dimension_numbers<[1], [0], [0], [1], [0, 0, 1, 1], [], []>} : vector<8x256xf32>, vector<256x128xf32>, vector<8x128xf32> -> vector<8x128xf32>
    %c0_8 = arith.constant 0 : index
    %c0_9 = arith.constant 0 : index
    %57 = vector.load %arg4[%c0_8, %c0_9] : memref<1x128xf32, #tpu.memory_space<vmem>>, vector<1x128xf32>
    %58 = vector.broadcast %57 : vector<1x128xf32> to vector<8x128xf32>
    %59 = arith.addf %56, %58 : vector<8x128xf32>
    %c0_10 = arith.constant 0 : index
    %c0_11 = arith.constant 0 : index
    %60 = vector.load %arg5[%c0_10, %c0_11] : memref<8x128xf32, #tpu.memory_space<vmem>>, vector<8x128xf32>
    tpu.vector_store %arg5[%c0_10, %c0_11], %59 {strides = array<i32>} : memref<8x128xf32, #tpu.memory_space<vmem>>, vector<8x128xf32>,
    return
  }
  func.func @transform_0(%arg0: i32) -> (i32, i32) {
    %c0_i32 = arith.constant 0 : i32
    %c0_i32_0 = arith.constant 0 : i32
    return %arg0, %c0_i32 : i32, i32
  }
  func.func @transform_1(%arg0: i32) -> (i32, i32) {
    %c0_i32 = arith.constant 0 : i32
    %c0_i32_0 = arith.constant 0 : i32
    %c0_i32_1 = arith.constant 0 : i32
    return %c0_i32, %c0_i32_0 : i32, i32
  }
  func.func @transform_2(%arg0: i32) -> (i32, i32) {
    %c0_i32 = arith.constant 0 : i32
    %c0_i32_0 = arith.constant 0 : i32
    %c0_i32_1 = arith.constant 0 : i32
    return %c0_i32, %c0_i32_0 : i32, i32
  }
  func.func @transform_3(%arg0: i32) -> (i32, i32) {
    %c0_i32 = arith.constant 0 : i32
    %c0_i32_0 = arith.constant 0 : i32
    %c0_i32_1 = arith.constant 0 : i32
    return %c0_i32, %c0_i32_0 : i32, i32
  }
  func.func @transform_4(%arg0: i32) -> (i32, i32) {
    %c0_i32 = arith.constant 0 : i32
    %c0_i32_0 = arith.constant 0 : i32
    return %arg0, %c0_i32 : i32, i32
  }
}

</mosaic_0001>

<llo_original>
// kernel: tpu_custom_call.1
$region0: #{tpu_custom_call.1}
  #allocation0 [shape = 'u32[]', space=smem, size = 0x4, offset = 0x4, fixed_abs, tag = 'smem constant byte address 0x4 - core index']
  #allocation1 [shape = 'u32[144,128]{1,0:T(1,128)}', space=vmem, size = 0x12000, scoped, tag = 'internal scratch']
  %s0 = inlined_call_operand.hbm [shape: s32[8,8], index: 0, kind: input, shape index: {}]
  %s1 = inlined_call_operand.hbm [shape: f32[512,256], index: 1, kind: input, shape index: {}]
  %s2 = inlined_call_operand.hbm [shape: f32[256,128], index: 2, kind: input, shape index: {}]
  %s3 = inlined_call_operand.vmem [shape: f32[1,128], index: 3, kind: input, shape index: {}]
  %s4 = inlined_call_operand.hbm [shape: f32[8,128], index: 4, kind: output, shape index: {}]
  %s5 = sld [smem:[#allocation0]]
  $region38: #{tpu_custom_call.1} parent=0
    _
  %s7 = ssub.s32 1, %s5
  %s8 = scalar_select 0, %s7, %s5
  $region1: #{tpu_custom_call.1} parent=0
    #allocation2 [shape = 'u8[4096]{0}', space=vmem, size = 0x1000, scoped, tag = 'input window, operand 0, single buffered']
    #allocation3 [shape = 's32[1]{0}', space=sflag, size = 0x4, scoped, tag = 'scoped memory for tpu_custom_call.1']
    #allocation4 [shape = 's32[1]{0}', space=sflag, size = 0x4, scoped, tag = 'scoped memory for tpu_custom_call.1']
    #allocation5 [shape = 'u8[524288]{0}', space=vmem, size = 0x80000, scoped, tag = 'input window, operand 1, single buffered']
    #allocation6 [shape = 's32[1]{0}', space=sflag, size = 0x4, scoped, tag = 'scoped memory for tpu_custom_call.1']
    #allocation7 [shape = 'u8[131072]{0}', space=vmem, size = 0x20000, scoped, tag = 'input window, operand 2, single buffered']
    #allocation8 [shape = 'u8[4096]{0}', space=vmem, size = 0x1000, scoped, tag = 'output window, operand 0, single buffered']
    %9 = vsyncpa [#allocation3], 0
    %10 = vsyncpa [#allocation6], 0
    %11 = vsyncpa [#allocation4], 0
    // Predicated region
    $region2: #{tpu_custom_call.1} parent=1 // pred_check
      _
    $region3: #{tpu_custom_call.1} parent=1 // pred_check_branch
      %13 = sbr.rel (0) target = $region5
    $region4: #{tpu_custom_call.1} parent=1 // pred_region
      %s15 = ssub.s32 128, 128
      %16 = vsyncadd [#allocation3], %s15
      %s18 = sshll.u32 [#allocation2], 4
      %s19 = int_to_ptr.vmem [resolvable:$true] %s18
      %21 = dma.hbm_to_vmem [thread:$0]  %s0, 128, %s19, [#allocation3]
    $region5: #{tpu_custom_call.1} parent=1 // pred_fallthru
      _
    // Predicated region
    $region6: #{tpu_custom_call.1} parent=1 // pred_check
      _
    $region7: #{tpu_custom_call.1} parent=1 // pred_check_branch
      %23 = sbr.rel (0) target = $region9
    $region8: #{tpu_custom_call.1} parent=1 // pred_region
      %s25 = ssub.s32 16384, 16384
      %26 = vsyncadd [#allocation6], %s25
      %s27 = sshll.u32 [#allocation5], 4
      %s28 = int_to_ptr.vmem [resolvable:$true] %s27
      %33 = dma.hbm_to_vmem [thread:$0]  %s1, 16384, %s28, [#allocation6], 256, 256, 16
    $region9: #{tpu_custom_call.1} parent=1 // pred_fallthru
      _
    // Predicated region
    $region10: #{tpu_custom_call.1} parent=1 // pred_check
      _
    $region11: #{tpu_custom_call.1} parent=1 // pred_check_branch
      %35 = sbr.rel (0) target = $region13
    $region12: #{tpu_custom_call.1} parent=1 // pred_region
      %s37 = ssub.s32 4096, 4096
      %38 = vsyncadd [#allocation6], %s37
      %s39 = sshll.u32 [#allocation7], 4
      %s40 = int_to_ptr.vmem [resolvable:$true] %s39
      %45 = dma.hbm_to_vmem [thread:$0]  %s2, 4096, %s40, [#allocation6], 128, 128, 8
    $region13: #{tpu_custom_call.1} parent=1 // pred_fallthru
      _
    // Predicated region
    $region14: #{tpu_custom_call.1} parent=1 // pred_check
      _
    $region15: #{tpu_custom_call.1} parent=1 // pred_check_branch
      %47 = sbr.rel (0) target = $region17
    $region16: #{tpu_custom_call.1} parent=1 // pred_region
      _
    $region17: #{tpu_custom_call.1} parent=1 // pred_fallthru
      _
    // Predicated region
    $region18: #{tpu_custom_call.1} parent=1 // pred_check
      _
    $region19: #{tpu_custom_call.1} parent=1 // pred_check_branch
      %49 = sbr.rel (0) target = $region21
    $region20: #{tpu_custom_call.1} parent=1 // pred_region
      %50 = dma.done [#allocation3], 128
    $region21: #{tpu_custom_call.1} parent=1 // pred_fallthru
      _
    // Predicated region
    $region22: #{tpu_custom_call.1} parent=1 // pred_check
      _
    $region23: #{tpu_custom_call.1} parent=1 // pred_check_branch
      %52 = sbr.rel (0) target = $region25
    $region24: #{tpu_custom_call.1} parent=1 // pred_region
      %53 = dma.done [#allocation6], 16384
    $region25: #{tpu_custom_call.1} parent=1 // pred_fallthru
      _
    // Predicated region
    $region26: #{tpu_custom_call.1} parent=1 // pred_check
      _
    $region27: #{tpu_custom_call.1} parent=1 // pred_check_branch
      %55 = sbr.rel (0) target = $region29
    $region28: #{tpu_custom_call.1} parent=1 // pred_region
      %56 = dma.done [#allocation6], 4096
    $region29: #{tpu_custom_call.1} parent=1 // pred_fallthru
      _
    %v57 = vld [vmem:[#allocation2] sm:$0xff]
    %v58 = vlaneseq
    %v59 = vand.u32 %v58, 127
    %v60 = vadd.s32 %v59, 128
    %v61 = vadd.s32 %v59, 256
    %v62 = vadd.s32 %v59, 384
    %63 = vset.pattern.permute.xlu0 0
    %64 = vperm.xlu0 %63, %v57
    %v65 = vpop.permute.xlu0 %64
    %vm66 = vcmp.eq.s32.totalorder %v59, %v65
    %vm67 = vcmp.eq.s32.totalorder %v60, %v65
    %vm68 = vcmp.eq.s32.totalorder %v61, %v65
    %vm69 = vcmp.eq.s32.totalorder %v62, %v65
    %v70 = vsel %vm66, 1, 0
    %v71 = vsel %vm67, 1, 0
    %v72 = vsel %vm68, 1, 0
    %v73 = vsel %vm69, 1, 0
    %v74 = vcvt.s32.f32 %v70
    %v75 = vcvt.s32.f32 %v71
    %v76 = vcvt.s32.f32 %v72
    %v77 = vcvt.s32.f32 %v73
    %v78 = vadd.f32 %v74, 0.0
    %v79 = vadd.f32 %v75, 0.0
    %v80 = vadd.f32 %v76, 0.0
    %v81 = vadd.f32 %v77, 0.0
    %82 = vset.pattern.permute.xlu0 1
    %83 = vperm.xlu0 %82, %v57
    %v84 = vpop.permute.xlu0 %83
    %vm85 = vcmp.eq.s32.totalorder %v59, %v84
    %vm86 = vcmp.eq.s32.totalorder %v60, %v84
    %vm87 = vcmp.eq.s32.totalorder %v61, %v84
    %vm88 = vcmp.eq.s32.totalorder %v62, %v84
    %v89 = vsel %vm85, 1, 0
    %v90 = vsel %vm86, 1, 0
    %v91 = vsel %vm87, 1, 0
    %v92 = vsel %vm88, 1, 0
    %v93 = vcvt.s32.f32 %v89
    %v94 = vcvt.s32.f32 %v90
    %v95 = vcvt.s32.f32 %v91
    %v96 = vcvt.s32.f32 %v92
    %v97 = vadd.f32 %v78, %v93
    %v98 = vadd.f32 %v79, %v94
    %v99 = vadd.f32 %v80, %v95
    %v100 = vadd.f32 %v81, %v96
    %101 = vset.pattern.permute.xlu0 2
    %102 = vperm.xlu0 %101, %v57
    %v103 = vpop.permute.xlu0 %102
    %vm104 = vcmp.eq.s32.totalorder %v59, %v103
    %vm105 = vcmp.eq.s32.totalorder %v60, %v103
    %vm106 = vcmp.eq.s32.totalorder %v61, %v103
    %vm107 = vcmp.eq.s32.totalorder %v62, %v103
    %v108 = vsel %vm104, 1, 0
    %v109 = vsel %vm105, 1, 0
    %v110 = vsel %vm106, 1, 0
    %v111 = vsel %vm107, 1, 0
    %v112 = vcvt.s32.f32 %v108
    %v113 = vcvt.s32.f32 %v109
    %v114 = vcvt.s32.f32 %v110
    %v115 = vcvt.s32.f32 %v111
    %v116 = vadd.f32 %v97, %v112
    %v117 = vadd.f32 %v98, %v113
    %v118 = vadd.f32 %v99, %v114
    %v119 = vadd.f32 %v100, %v115
    %120 = vset.pattern.permute.xlu0 3
    %121 = vperm.xlu0 %120, %v57
    %v122 = vpop.permute.xlu0 %121
    %vm123 = vcmp.eq.s32.totalorder %v59, %v122
    %vm124 = vcmp.eq.s32.totalorder %v60, %v122
    %vm125 = vcmp.eq.s32.totalorder %v61, %v122
    %vm126 = vcmp.eq.s32.totalorder %v62, %v122
    %v127 = vsel %vm123, 1, 0
    %v128 = vsel %vm124, 1, 0
    %v129 = vsel %vm125, 1, 0
    %v130 = vsel %vm126, 1, 0
    %v131 = vcvt.s32.f32 %v127
    %v132 = vcvt.s32.f32 %v128
    %v133 = vcvt.s32.f32 %v129
    %v134 = vcvt.s32.f32 %v130
    %v135 = vadd.f32 %v116, %v131
    %v136 = vadd.f32 %v117, %v132
    %v137 = vadd.f32 %v118, %v133
    %v138 = vadd.f32 %v119, %v134
    %139 = vset.pattern.permute.xlu0 4
    %140 = vperm.xlu0 %139, %v57
    %v141 = vpop.permute.xlu0 %140
    %vm142 = vcmp.eq.s32.totalorder %v59, %v141
    %vm143 = vcmp.eq.s32.totalorder %v60, %v141
    %vm144 = vcmp.eq.s32.totalorder %v61, %v141
    %vm145 = vcmp.eq.s32.totalorder %v62, %v141
    %v146 = vsel %vm142, 1, 0
    %v147 = vsel %vm143, 1, 0
    %v148 = vsel %vm144, 1, 0
    %v149 = vsel %vm145, 1, 0
    %v150 = vcvt.s32.f32 %v146
    %v151 = vcvt.s32.f32 %v147
    %v152 = vcvt.s32.f32 %v148
    %v153 = vcvt.s32.f32 %v149
    %v154 = vadd.f32 %v135, %v150
    %v155 = vadd.f32 %v136, %v151
    %v156 = vadd.f32 %v137, %v152
    %v157 = vadd.f32 %v138, %v153
    %158 = vset.pattern.permute.xlu0 5
    %159 = vperm.xlu0 %158, %v57
    %v160 = vpop.permute.xlu0 %159
    %vm161 = vcmp.eq.s32.totalorder %v59, %v160
    %vm162 = vcmp.eq.s32.totalorder %v60, %v160
    %vm163 = vcmp.eq.s32.totalorder %v61, %v160
    %vm164 = vcmp.eq.s32.totalorder %v62, %v160
    %v165 = vsel %vm161, 1, 0
    %v166 = vsel %vm162, 1, 0
    %v167 = vsel %vm163, 1, 0
    %v168 = vsel %vm164, 1, 0
    %v169 = vcvt.s32.f32 %v165
    %v170 = vcvt.s32.f32 %v166
    %v171 = vcvt.s32.f32 %v167
    %v172 = vcvt.s32.f32 %v168
    %v173 = vadd.f32 %v154, %v169
    %v174 = vadd.f32 %v155, %v170
    %v175 = vadd.f32 %v156, %v171
    %v176 = vadd.f32 %v157, %v172
    %177 = vset.pattern.permute.xlu0 6
    %178 = vperm.xlu0 %177, %v57
    %v179 = vpop.permute.xlu0 %178
    %vm180 = vcmp.eq.s32.totalorder %v59, %v179
    %vm181 = vcmp.eq.s32.totalorder %v60, %v179
    %vm182 = vcmp.eq.s32.totalorder %v61, %v179
    %vm183 = vcmp.eq.s32.totalorder %v62, %v179
    %v184 = vsel %vm180, 1, 0
    %v185 = vsel %vm181, 1, 0
    %v186 = vsel %vm182, 1, 0
    %v187 = vsel %vm183, 1, 0
    %v188 = vcvt.s32.f32 %v184
    %v189 = vcvt.s32.f32 %v185
    %v190 = vcvt.s32.f32 %v186
    %v191 = vcvt.s32.f32 %v187
    %v192 = vadd.f32 %v173, %v188
    %v193 = vadd.f32 %v174, %v189
    %v194 = vadd.f32 %v175, %v190
    %v195 = vadd.f32 %v176, %v191
    %196 = vset.pattern.permute.xlu0 7
    %197 = vperm.xlu0 %196, %v57
    %v198 = vpop.permute.xlu0 %197
    %vm199 = vcmp.eq.s32.totalorder %v59, %v198
    %vm200 = vcmp.eq.s32.totalorder %v60, %v198
    %vm201 = vcmp.eq.s32.totalorder %v61, %v198
    %vm202 = vcmp.eq.s32.totalorder %v62, %v198
    %v203 = vsel %vm199, 1, 0
    %v204 = vsel %vm200, 1, 0
    %v205 = vsel %vm201, 1, 0
    %v206 = vsel %vm202, 1, 0
    %v207 = vcvt.s32.f32 %v203
    %v208 = vcvt.s32.f32 %v204
    %v209 = vcvt.s32.f32 %v205
    %v210 = vcvt.s32.f32 %v206
    %v211 = vadd.f32 %v192, %v207
    %v212 = vadd.f32 %v193, %v208
    %v213 = vadd.f32 %v194, %v209
    %v214 = vadd.f32 %v195, %v210
    %v215 = vld [vmem:[#allocation5] sm:$0xff]
    %v216 = vld [vmem:[#allocation5 + $0x8] sm:$0xff]
    %v217 = vld [vmem:[#allocation5 + $0x10] sm:$0xff]
    %v218 = vld [vmem:[#allocation5 + $0x18] sm:$0xff]
    %v219 = vld [vmem:[#allocation5 + $0x20] sm:$0xff]
    %v220 = vld [vmem:[#allocation5 + $0x28] sm:$0xff]
    %v221 = vld [vmem:[#allocation5 + $0x30] sm:$0xff]
    %v222 = vld [vmem:[#allocation5 + $0x38] sm:$0xff]
    %v223 = vld [vmem:[#allocation5 + $0x40] sm:$0xff]
    %v224 = vld [vmem:[#allocation5 + $0x48] sm:$0xff]
    %v225 = vld [vmem:[#allocation5 + $0x50] sm:$0xff]
    %v226 = vld [vmem:[#allocation5 + $0x58] sm:$0xff]
    %v227 = vld [vmem:[#allocation5 + $0x60] sm:$0xff]
    %v228 = vld [vmem:[#allocation5 + $0x68] sm:$0xff]
    %v229 = vld [vmem:[#allocation5 + $0x70] sm:$0xff]
    %v230 = vld [vmem:[#allocation5 + $0x78] sm:$0xff]
    %v231 = vld [vmem:[#allocation5 + $0x80] sm:$0xff]
    %v232 = vld [vmem:[#allocation5 + $0x88] sm:$0xff]
    %v233 = vld [vmem:[#allocation5 + $0x90] sm:$0xff]
    %v234 = vld [vmem:[#allocation5 + $0x98] sm:$0xff]
    %v235 = vld [vmem:[#allocation5 + $0xa0] sm:$0xff]
    %v236 = vld [vmem:[#allocation5 + $0xa8] sm:$0xff]
    %v237 = vld [vmem:[#allocation5 + $0xb0] sm:$0xff]
    %v238 = vld [vmem:[#allocation5 + $0xb8] sm:$0xff]
    %v239 = vld [vmem:[#allocation5 + $0xc0] sm:$0xff]
    %v240 = vld [vmem:[#allocation5 + $0xc8] sm:$0xff]
    %v241 = vld [vmem:[#allocation5 + $0xd0] sm:$0xff]
    %v242 = vld [vmem:[#allocation5 + $0xd8] sm:$0xff]
    %v243 = vld [vmem:[#allocation5 + $0xe0] sm:$0xff]
    %v244 = vld [vmem:[#allocation5 + $0xe8] sm:$0xff]
    %v245 = vld [vmem:[#allocation5 + $0xf0] sm:$0xff]
    %v246 = vld [vmem:[#allocation5 + $0xf8] sm:$0xff]
    %v247 = vld [vmem:[#allocation5 + $0x100] sm:$0xff]
    %v248 = vld [vmem:[#allocation5 + $0x108] sm:$0xff]
    %v249 = vld [vmem:[#allocation5 + $0x110] sm:$0xff]
    %v250 = vld [vmem:[#allocation5 + $0x118] sm:$0xff]
    %v251 = vld [vmem:[#allocation5 + $0x120] sm:$0xff]
    %v252 = vld [vmem:[#allocation5 + $0x128] sm:$0xff]
    %v253 = vld [vmem:[#allocation5 + $0x130] sm:$0xff]
    %v254 = vld [vmem:[#allocation5 + $0x138] sm:$0xff]
    %v255 = vld [vmem:[#allocation5 + $0x140] sm:$0xff]
    %v256 = vld [vmem:[#allocation5 + $0x148] sm:$0xff]
    %v257 = vld [vmem:[#allocation5 + $0x150] sm:$0xff]
    %v258 = vld [vmem:[#allocation5 + $0x158] sm:$0xff]
    %v259 = vld [vmem:[#allocation5 + $0x160] sm:$0xff]
    %v260 = vld [vmem:[#allocation5 + $0x168] sm:$0xff]
    %v261 = vld [vmem:[#allocation5 + $0x170] sm:$0xff]
    %v262 = vld [vmem:[#allocation5 + $0x178] sm:$0xff]
    %v263 = vld [vmem:[#allocation5 + $0x180] sm:$0xff]
    %v264 = vld [vmem:[#allocation5 + $0x188] sm:$0xff]
    %v265 = vld [vmem:[#allocation5 + $0x190] sm:$0xff]
    %v266 = vld [vmem:[#allocation5 + $0x198] sm:$0xff]
    %v267 = vld [vmem:[#allocation5 + $0x1a0] sm:$0xff]
    %v268 = vld [vmem:[#allocation5 + $0x1a8] sm:$0xff]
    %v269 = vld [vmem:[#allocation5 + $0x1b0] sm:$0xff]
    %v270 = vld [vmem:[#allocation5 + $0x1b8] sm:$0xff]
    %v271 = vld [vmem:[#allocation5 + $0x1c0] sm:$0xff]
    %v272 = vld [vmem:[#allocation5 + $0x1c8] sm:$0xff]
    %v273 = vld [vmem:[#allocation5 + $0x1d0] sm:$0xff]
    %v274 = vld [vmem:[#allocation5 + $0x1d8] sm:$0xff]
    %v275 = vld [vmem:[#allocation5 + $0x1e0] sm:$0xff]
    %v276 = vld [vmem:[#allocation5 + $0x1e8] sm:$0xff]
    %v277 = vld [vmem:[#allocation5 + $0x1f0] sm:$0xff]
    %v278 = vld [vmem:[#allocation5 + $0x1f8] sm:$0xff]
    %v279 = vld [vmem:[#allocation5 + $0x200] sm:$0xff]
    %v280 = vld [vmem:[#allocation5 + $0x208] sm:$0xff]
    %v281 = vld [vmem:[#allocation5 + $0x210] sm:$0xff]
    %v282 = vld [vmem:[#allocation5 + $0x218] sm:$0xff]
    %v283 = vld [vmem:[#allocation5 + $0x220] sm:$0xff]
    %v284 = vld [vmem:[#allocation5 + $0x228] sm:$0xff]
    %v285 = vld [vmem:[#allocation5 + $0x230] sm:$0xff]
    %v286 = vld [vmem:[#allocation5 + $0x238] sm:$0xff]
    %v287 = vld [vmem:[#allocation5 + $0x240] sm:$0xff]
    %v288 = vld [vmem:[#allocation5 + $0x248] sm:$0xff]
    %v289 = vld [vmem:[#allocation5 + $0x250] sm:$0xff]
    %v290 = vld [vmem:[#allocation5 + $0x258] sm:$0xff]
    %v291 = vld [vmem:[#allocation5 + $0x260] sm:$0xff]
    %v292 = vld [vmem:[#allocation5 + $0x268] sm:$0xff]
    %v293 = vld [vmem:[#allocation5 + $0x270] sm:$0xff]
    %v294 = vld [vmem:[#allocation5 + $0x278] sm:$0xff]
    %v295 = vld [vmem:[#allocation5 + $0x280] sm:$0xff]
    %v296 = vld [vmem:[#allocation5 + $0x288] sm:$0xff]
    %v297 = vld [vmem:[#allocation5 + $0x290] sm:$0xff]
    %v298 = vld [vmem:[#allocation5 + $0x298] sm:$0xff]
    %v299 = vld [vmem:[#allocation5 + $0x2a0] sm:$0xff]
    %v300 = vld [vmem:[#allocation5 + $0x2a8] sm:$0xff]
    %v301 = vld [vmem:[#allocation5 + $0x2b0] sm:$0xff]
    %v302 = vld [vmem:[#allocation5 + $0x2b8] sm:$0xff]
    %v303 = vld [vmem:[#allocation5 + $0x2c0] sm:$0xff]
    %v304 = vld [vmem:[#allocation5 + $0x2c8] sm:$0xff]
    %v305 = vld [vmem:[#allocation5 + $0x2d0] sm:$0xff]
    %v306 = vld [vmem:[#allocation5 + $0x2d8] sm:$0xff]
    %v307 = vld [vmem:[#allocation5 + $0x2e0] sm:$0xff]
    %v308 = vld [vmem:[#allocation5 + $0x2e8] sm:$0xff]
    %v309 = vld [vmem:[#allocation5 + $0x2f0] sm:$0xff]
    %v310 = vld [vmem:[#allocation5 + $0x2f8] sm:$0xff]
    %v311 = vld [vmem:[#allocation5 + $0x300] sm:$0xff]
    %v312 = vld [vmem:[#allocation5 + $0x308] sm:$0xff]
    %v313 = vld [vmem:[#allocation5 + $0x310] sm:$0xff]
    %v314 = vld [vmem:[#allocation5 + $0x318] sm:$0xff]
    %v315 = vld [vmem:[#allocation5 + $0x320] sm:$0xff]
    %v316 = vld [vmem:[#allocation5 + $0x328] sm:$0xff]
    %v317 = vld [vmem:[#allocation5 + $0x330] sm:$0xff]
    %v318 = vld [vmem:[#allocation5 + $0x338] sm:$0xff]
    %v319 = vld [vmem:[#allocation5 + $0x340] sm:$0xff]
    %v320 = vld [vmem:[#allocation5 + $0x348] sm:$0xff]
    %v321 = vld [vmem:[#allocation5 + $0x350] sm:$0xff]
    %v322 = vld [vmem:[#allocation5 + $0x358] sm:$0xff]
    %v323 = vld [vmem:[#allocation5 + $0x360] sm:$0xff]
    %v324 = vld [vmem:[#allocation5 + $0x368] sm:$0xff]
    %v325 = vld [vmem:[#allocation5 + $0x370] sm:$0xff]
    %v326 = vld [vmem:[#allocation5 + $0x378] sm:$0xff]
    %v327 = vld [vmem:[#allocation5 + $0x380] sm:$0xff]
    %v328 = vld [vmem:[#allocation5 + $0x388] sm:$0xff]
    %v329 = vld [vmem:[#allocation5 + $0x390] sm:$0xff]
    %v330 = vld [vmem:[#allocation5 + $0x398] sm:$0xff]
    %v331 = vld [vmem:[#allocation5 + $0x3a0] sm:$0xff]
    %v332 = vld [vmem:[#allocation5 + $0x3a8] sm:$0xff]
    %v333 = vld [vmem:[#allocation5 + $0x3b0] sm:$0xff]
    %v334 = vld [vmem:[#allocation5 + $0x3b8] sm:$0xff]
    %v335 = vld [vmem:[#allocation5 + $0x3c0] sm:$0xff]
    %v336 = vld [vmem:[#allocation5 + $0x3c8] sm:$0xff]
    %v337 = vld [vmem:[#allocation5 + $0x3d0] sm:$0xff]
    %v338 = vld [vmem:[#allocation5 + $0x3d8] sm:$0xff]
    %v339 = vld [vmem:[#allocation5 + $0x3e0] sm:$0xff]
    %v340 = vld [vmem:[#allocation5 + $0x3e8] sm:$0xff]
    %v341 = vld [vmem:[#allocation5 + $0x3f0] sm:$0xff]
    %v342 = vld [vmem:[#allocation5 + $0x3f8] sm:$0xff]
    %343 = vmatprep.subr.mxu0 %v216
    %344 = vmatpush1.msra.mxu0 %v215
    %345 = vmatprep.subr.mxu0 %v218
    %346 = vmatpush1.msra.mxu0 %v217
    %347 = vmatprep.subr.mxu0 %v220
    %348 = vmatpush1.msra.mxu0 %v219
    %349 = vmatprep.subr.mxu0 %v222
    %350 = vmatpush1.msra.mxu0 %v221
    %351 = vmatprep.subr.mxu0 %v224
    %352 = vmatpush1.msra.mxu0 %v223
    %353 = vmatprep.subr.mxu0 %v226
    %354 = vmatpush1.msra.mxu0 %v225
    %355 = vmatprep.subr.mxu0 %v228
    %356 = vmatpush1.msra.mxu0 %v227
    %357 = vmatprep.subr.mxu0 %v230
    %358 = vmatpush1.msra.mxu0 %v229
    %359 = vmatprep.subr.mxu0 %v232
    %360 = vmatpush1.msra.mxu0 %v231
    %361 = vmatprep.subr.mxu0 %v234
    %362 = vmatpush1.msra.mxu0 %v233
    %363 = vmatprep.subr.mxu0 %v236
    %364 = vmatpush1.msra.mxu0 %v235
    %365 = vmatprep.subr.mxu0 %v238
    %366 = vmatpush1.msra.mxu0 %v237
    %367 = vmatprep.subr.mxu0 %v240
    %368 = vmatpush1.msra.mxu0 %v239
    %369 = vmatprep.subr.mxu0 %v242
    %370 = vmatpush1.msra.mxu0 %v241
    %371 = vmatprep.subr.mxu0 %v244
    %372 = vmatpush1.msra.mxu0 %v243
    %373 = vmatprep.subr.mxu0 %v246
    %374 = vmatpush1.msra.mxu0 %v245
    %375 = vmatprep.subr.mxu0 %v248
    %376 = vmatpush1.msra.mxu0 %v247
    %377 = vmatprep.subr.mxu0 %v250
    %378 = vmatpush1.msra.mxu0 %v249
    %379 = vmatprep.subr.mxu0 %v252
    %380 = vmatpush1.msra.mxu0 %v251
    %381 = vmatprep.subr.mxu0 %v254
    %382 = vmatpush1.msra.mxu0 %v253
    %383 = vmatprep.subr.mxu0 %v256
    %384 = vmatpush1.msra.mxu0 %v255
    %385 = vmatprep.subr.mxu0 %v258
    %386 = vmatpush1.msra.mxu0 %v257
    %387 = vmatprep.subr.mxu0 %v260
    %388 = vmatpush1.msra.mxu0 %v259
    %389 = vmatprep.subr.mxu0 %v262
    %390 = vmatpush1.msra.mxu0 %v261
    %391 = vmatprep.subr.mxu0 %v264
    %392 = vmatpush1.msra.mxu0 %v263
    %393 = vmatprep.subr.mxu0 %v266
    %394 = vmatpush1.msra.mxu0 %v265
    %395 = vmatprep.subr.mxu0 %v268
    %396 = vmatpush1.msra.mxu0 %v267
    %397 = vmatprep.subr.mxu0 %v270
    %398 = vmatpush1.msra.mxu0 %v269
    %399 = vmatprep.subr.mxu0 %v272
    %400 = vmatpush1.msra.mxu0 %v271
    %401 = vmatprep.subr.mxu0 %v274
    %402 = vmatpush1.msra.mxu0 %v273
    %403 = vmatprep.subr.mxu0 %v276
    %404 = vmatpush1.msra.mxu0 %v275
    %405 = vmatprep.subr.mxu0 %v278
    %406 = vmatpush1.msra.mxu0 %v277
    %407 = vmatprep.mubr.f32.mxu0 %v212
    %408 = vmatmul.mubr.f32.gmra.mrb[0].mxu0 %v211
    %v409 = vpop.f32.mrb[0].mxu0
    %v410 = vadd.f32 0.0, %v409
    %v411 = vpop.f32.mrb[0].mxu0
    %v412 = vadd.f32 0.0, %v411
    %413 = vdwg.mxu0
    %414 = vmatprep.subr.mxu0 %v280
    %415 = vmatpush1.msra.mxu0 %v279
    %416 = vmatprep.subr.mxu0 %v282
    %417 = vmatpush1.msra.mxu0 %v281
    %418 = vmatprep.subr.mxu0 %v284
    %419 = vmatpush1.msra.mxu0 %v283
    %420 = vmatprep.subr.mxu0 %v286
    %421 = vmatpush1.msra.mxu0 %v285
    %422 = vmatprep.subr.mxu0 %v288
    %423 = vmatpush1.msra.mxu0 %v287
    %424 = vmatprep.subr.mxu0 %v290
    %425 = vmatpush1.msra.mxu0 %v289
    %426 = vmatprep.subr.mxu0 %v292
    %427 = vmatpush1.msra.mxu0 %v291
    %428 = vmatprep.subr.mxu0 %v294
    %429 = vmatpush1.msra.mxu0 %v293
    %430 = vmatprep.subr.mxu0 %v296
    %431 = vmatpush1.msra.mxu0 %v295
    %432 = vmatprep.subr.mxu0 %v298
    %433 = vmatpush1.msra.mxu0 %v297
    %434 = vmatprep.subr.mxu0 %v300
    %435 = vmatpush1.msra.mxu0 %v299
    %436 = vmatprep.subr.mxu0 %v302
    %437 = vmatpush1.msra.mxu0 %v301
    %438 = vmatprep.subr.mxu0 %v304
    %439 = vmatpush1.msra.mxu0 %v303
    %440 = vmatprep.subr.mxu0 %v306
    %441 = vmatpush1.msra.mxu0 %v305
    %442 = vmatprep.subr.mxu0 %v308
    %443 = vmatpush1.msra.mxu0 %v307
    %444 = vmatprep.subr.mxu0 %v310
    %445 = vmatpush1.msra.mxu0 %v309
    %446 = vmatprep.subr.mxu0 %v312
    %447 = vmatpush1.msra.mxu0 %v311
    %448 = vmatprep.subr.mxu0 %v314
    %449 = vmatpush1.msra.mxu0 %v313
    %450 = vmatprep.subr.mxu0 %v316
    %451 = vmatpush1.msra.mxu0 %v315
    %452 = vmatprep.subr.mxu0 %v318
    %453 = vmatpush1.msra.mxu0 %v317
    %454 = vmatprep.subr.mxu0 %v320
    %455 = vmatpush1.msra.mxu0 %v319
    %456 = vmatprep.subr.mxu0 %v322
    %457 = vmatpush1.msra.mxu0 %v321
    %458 = vmatprep.subr.mxu0 %v324
    %459 = vmatpush1.msra.mxu0 %v323
    %460 = vmatprep.subr.mxu0 %v326
    %461 = vmatpush1.msra.mxu0 %v325
    %462 = vmatprep.subr.mxu0 %v328
    %463 = vmatpush1.msra.mxu0 %v327
    %464 = vmatprep.subr.mxu0 %v330
    %465 = vmatpush1.msra.mxu0 %v329
    %466 = vmatprep.subr.mxu0 %v332
    %467 = vmatpush1.msra.mxu0 %v331
    %468 = vmatprep.subr.mxu0 %v334
    %469 = vmatpush1.msra.mxu0 %v333
    %470 = vmatprep.subr.mxu0 %v336
    %471 = vmatpush1.msra.mxu0 %v335
    %472 = vmatprep.subr.mxu0 %v338
    %473 = vmatpush1.msra.mxu0 %v337
    %474 = vmatprep.subr.mxu0 %v340
    %475 = vmatpush1.msra.mxu0 %v339
    %476 = vmatprep.subr.mxu0 %v342
    %477 = vmatpush1.msra.mxu0 %v341
    %478 = vmatprep.mubr.f32.mxu0 %v214
    %479 = vmatmul.mubr.f32.gmra.mrb[0].mxu0 %v213
    %v480 = vpop.f32.mrb[0].mxu0
    %v481 = vadd.f32 %v410, %v480
    %v482 = vpop.f32.mrb[0].mxu0
    %v483 = vadd.f32 %v412, %v482
    %484 = vdwg.mxu0
    %v485 = vmul.f32 %v481, 0.125
    %v486 = vmul.f32 %v483, 0.125
    %v487 = vld [vmem:[#allocation7] sm:$0xff]
    %v488 = vld [vmem:[#allocation7 + $0x8] sm:$0xff]
    %v489 = vld [vmem:[#allocation7 + $0x10] sm:$0xff]
    %v490 = vld [vmem:[#allocation7 + $0x18] sm:$0xff]
    %v491 = vld [vmem:[#allocation7 + $0x20] sm:$0xff]
    %v492 = vld [vmem:[#allocation7 + $0x28] sm:$0xff]
    %v493 = vld [vmem:[#allocation7 + $0x30] sm:$0xff]
    %v494 = vld [vmem:[#allocation7 + $0x38] sm:$0xff]
    %v495 = vld [vmem:[#allocation7 + $0x40] sm:$0xff]
    %v496 = vld [vmem:[#allocation7 + $0x48] sm:$0xff]
    %v497 = vld [vmem:[#allocation7 + $0x50] sm:$0xff]
    %v498 = vld [vmem:[#allocation7 + $0x58] sm:$0xff]
    %v499 = vld [vmem:[#allocation7 + $0x60] sm:$0xff]
    %v500 = vld [vmem:[#allocation7 + $0x68] sm:$0xff]
    %v501 = vld [vmem:[#allocation7 + $0x70] sm:$0xff]
    %v502 = vld [vmem:[#allocation7 + $0x78] sm:$0xff]
    %v503 = vld [vmem:[#allocation7 + $0x80] sm:$0xff]
    %v504 = vld [vmem:[#allocation7 + $0x88] sm:$0xff]
    %v505 = vld [vmem:[#allocation7 + $0x90] sm:$0xff]
    %v506 = vld [vmem:[#allocation7 + $0x98] sm:$0xff]
    %v507 = vld [vmem:[#allocation7 + $0xa0] sm:$0xff]
    %v508 = vld [vmem:[#allocation7 + $0xa8] sm:$0xff]
    %v509 = vld [vmem:[#allocation7 + $0xb0] sm:$0xff]
    %v510 = vld [vmem:[#allocation7 + $0xb8] sm:$0xff]
    %v511 = vld [vmem:[#allocation7 + $0xc0] sm:$0xff]
    %v512 = vld [vmem:[#allocation7 + $0xc8] sm:$0xff]
    %v513 = vld [vmem:[#allocation7 + $0xd0] sm:$0xff]
    %v514 = vld [vmem:[#allocation7 + $0xd8] sm:$0xff]
    %v515 = vld [vmem:[#allocation7 + $0xe0] sm:$0xff]
    %v516 = vld [vmem:[#allocation7 + $0xe8] sm:$0xff]
    %v517 = vld [vmem:[#allocation7 + $0xf0] sm:$0xff]
    %v518 = vld [vmem:[#allocation7 + $0xf8] sm:$0xff]
    %v519 = vld [vmem:[%s3] sm:$0x1]
    %v521 = vlaneseq
    %v522 = vshrl.u32 %v521, 7
    %v523 = vsub.s32 0, %v522
    %v524 = vrot.slane %v519, %v523
    %526 = vmatprep.subr.mxu0 0.0
    %527 = vmatpush1.msra.mxu0 %v487
    %528 = vmatprep.subr.mxu0 0.0
    %529 = vmatpush1.msra.mxu0 %v488
    %530 = vmatprep.subr.mxu0 0.0
    %531 = vmatpush1.msra.mxu0 %v489
    %532 = vmatprep.subr.mxu0 0.0
    %533 = vmatpush1.msra.mxu0 %v490
    %534 = vmatprep.subr.mxu0 0.0
    %535 = vmatpush1.msra.mxu0 %v491
    %536 = vmatprep.subr.mxu0 0.0
    %537 = vmatpush1.msra.mxu0 %v492
    %538 = vmatprep.subr.mxu0 0.0
    %539 = vmatpush1.msra.mxu0 %v493
    %540 = vmatprep.subr.mxu0 0.0
    %541 = vmatpush1.msra.mxu0 %v494
    %542 = vmatprep.subr.mxu0 0.0
    %543 = vmatpush1.msra.mxu0 %v495
    %544 = vmatprep.subr.mxu0 0.0
    %545 = vmatpush1.msra.mxu0 %v496
    %546 = vmatprep.subr.mxu0 0.0
    %547 = vmatpush1.msra.mxu0 %v497
    %548 = vmatprep.subr.mxu0 0.0
    %549 = vmatpush1.msra.mxu0 %v498
    %550 = vmatprep.subr.mxu0 0.0
    %551 = vmatpush1.msra.mxu0 %v499
    %552 = vmatprep.subr.mxu0 0.0
    %553 = vmatpush1.msra.mxu0 %v500
    %554 = vmatprep.subr.mxu0 0.0
    %555 = vmatpush1.msra.mxu0 %v501
    %556 = vmatprep.subr.mxu0 0.0
    %557 = vmatpush1.msra.mxu0 %v502
    %558 = vmatprep.subr.mxu0 0.0
    %559 = vmatpush1.msra.mxu0 %v503
    %560 = vmatprep.subr.mxu0 0.0
    %561 = vmatpush1.msra.mxu0 %v504
    %562 = vmatprep.subr.mxu0 0.0
    %563 = vmatpush1.msra.mxu0 %v505
    %564 = vmatprep.subr.mxu0 0.0
    %565 = vmatpush1.msra.mxu0 %v506
    %566 = vmatprep.subr.mxu0 0.0
    %567 = vmatpush1.msra.mxu0 %v507
    %568 = vmatprep.subr.mxu0 0.0
    %569 = vmatpush1.msra.mxu0 %v508
    %570 = vmatprep.subr.mxu0 0.0
    %571 = vmatpush1.msra.mxu0 %v509
    %572 = vmatprep.subr.mxu0 0.0
    %573 = vmatpush1.msra.mxu0 %v510
    %574 = vmatprep.subr.mxu0 0.0
    %575 = vmatpush1.msra.mxu0 %v511
    %576 = vmatprep.subr.mxu0 0.0
    %577 = vmatpush1.msra.mxu0 %v512
    %578 = vmatprep.subr.mxu0 0.0
    %579 = vmatpush1.msra.mxu0 %v513
    %580 = vmatprep.subr.mxu0 0.0
    %581 = vmatpush1.msra.mxu0 %v514
    %582 = vmatprep.subr.mxu0 0.0
    %583 = vmatpush1.msra.mxu0 %v515
    %584 = vmatprep.subr.mxu0 0.0
    %585 = vmatpush1.msra.mxu0 %v516
    %586 = vmatprep.subr.mxu0 0.0
    %587 = vmatpush1.msra.mxu0 %v517
    %588 = vmatprep.subr.mxu0 0.0
    %589 = vmatpush1.msra.mxu0 %v518
    %590 = vmatprep.mubr.f32.mxu0 %v486
    %591 = vmatmul.mubr.f32.gmra.mrb[0].mxu0 %v485
    %v592 = vpop.f32.mrb[0].mxu0
    %v593 = vadd.f32 %v524, %v592
    %v594 = vpop.f32.mrb[0].mxu0
    %595 = vdwg.mxu0
    %596 = vst [vmem:[#allocation8] sm:$0xff] %v593
    // Predicated region
    $region30: #{tpu_custom_call.1} parent=1 // pred_check
      _
    $region31: #{tpu_custom_call.1} parent=1 // pred_check_branch
      %598 = sbr.rel (0) target = $region33
    $region32: #{tpu_custom_call.1} parent=1 // pred_region
      %s600 = ssub.s32 128, 128
      %601 = vsyncadd [#allocation4], %s600
      %s603 = sshll.u32 [#allocation8], 4
      %s604 = int_to_ptr.vmem [resolvable:$true] %s603
      %606 = dma.vmem_to_hbm [thread:$0]  %s604, 128, %s4, [#allocation4]
    $region33: #{tpu_custom_call.1} parent=1 // pred_fallthru
      _
    // Predicated region
    $region34: #{tpu_custom_call.1} parent=1 // pred_check
      _
    $region35: #{tpu_custom_call.1} parent=1 // pred_check_branch
      %608 = sbr.rel (0) target = $region37
    $region36: #{tpu_custom_call.1} parent=1 // pred_region
      %609 = dma.done [#allocation4], 128
    $region37: #{tpu_custom_call.1} parent=1 // pred_fallthru
      _
    %610 = vsyncpa [#allocation3], 1
    %611 = vsyncpa [#allocation6], 1
    %612 = vsyncpa [#allocation4], 1

</llo_original>
